<compile_context>
chip_gen: v7x
topology: tpu7x:2x2x1
jax: 0.10.0
libtpu: 0.0.40
codegen_flags: <defaults>
</compile_context>

<pallas_src>
import jax
import jax.numpy as jnp
from jax.experimental import pallas as pl
from jax.experimental.pallas import tpu as pltpu


# ---------------------------------------------------------------------------
# Kernels
# ---------------------------------------------------------------------------

def _conv1d_kernel_fullk(x_ref, w_ref, b_ref, o_ref):
    """nk == 1 fast path: single MXU matmul + bias, no scratch accumulator."""
    o_ref[...] = (
        jnp.dot(x_ref[...], w_ref[...], preferred_element_type=jnp.float32)
        + b_ref[...]
    ).astype(o_ref.dtype)


def _conv1d_kernel_ksplit(x_ref, w_ref, b_ref, o_ref, acc_ref):
    """K-tiled path: f32 VMEM accumulator, initialized with the first product."""
    k = pl.program_id(2)
    prod = jnp.dot(x_ref[...], w_ref[...], preferred_element_type=jnp.float32)

    @pl.when(k == 0)
    def _init():
        acc_ref[...] = prod

    @pl.when(k > 0)
    def _accumulate():
        acc_ref[...] += prod

    @pl.when(k == pl.num_programs(2) - 1)
    def _finalize():
        o_ref[...] = (acc_ref[...] + b_ref[...]).astype(o_ref.dtype)


# ---------------------------------------------------------------------------
# Tile-selection helpers
# ---------------------------------------------------------------------------

def _pad_up(v, q):
    return ((v + q - 1) // q) * q


def _round_down(v, q):
    return max(q, (v // q) * q)


def _sublane_quantum(itemsize):
    # f32 -> 8, bf16 -> 16, int8/fp8 -> 32
    return max(8, 32 // itemsize)


def _tile_bytes(rows, cols, itemsize):
    return _pad_up(rows, _sublane_quantum(itemsize)) * _pad_up(cols, 128) * itemsize


def _vmem_capacity_bytes():
    try:
        cap = getattr(pltpu.get_tpu_info(), "vmem_capacity_bytes", None)
        if cap:
            return int(cap)
    except Exception:
        pass
    return 64 * 1024 * 1024  # conservative fallback: v7x per-TC VMEM


def _vmem_need(tm, tn, tk, nk, xsize, wsize, osize):
    need = (2 * _tile_bytes(tm, tk, xsize)      # x tiles (double-buffered)
            + 2 * _tile_bytes(tk, tn, wsize)    # w tiles (double-buffered)
            + 2 * _tile_bytes(tm, tn, osize)    # out tiles (double-buffered)
            + 2 * _tile_bytes(1, tn, 4))        # f32 bias, padded to 8 sublanes
    if nk > 1:
        need += _tile_bytes(tm, tn, 4)          # f32 accumulator scratch
    return need


def _tk_candidates(nx, tk_max=None):
    """Full-K first, then 128-multiple divisors of nx (largest first)."""
    cands = [nx]
    top = (nx // 128) * 128
    for c in range(top, 0, -128):
        if c != nx and nx % c == 0:
            cands.append(c)
    if tk_max is not None:
        capped = [c for c in cands if c <= tk_max]
        cands = capped if capped else [min(cands)]
    return cands


# ---------------------------------------------------------------------------
# Wrapper
# ---------------------------------------------------------------------------

def conv1d(x, w, b, *, cast_to_bf16=False, tm_max=None, tn_max=None, tk_max=None):
    """Equivalent of Conv1D.forward with rf == 1.

    x: (..., nx)  w: (nx, nf)  b: (nf,)  ->  (..., nf)
    """
    nx, nf = w.shape
    lead = x.shape[:-1]
    out_dtype = x.dtype
    x2d = x.reshape(-1, nx)
    M = x2d.shape[0]

    # Optional: feed the MXU its native dtype; accumulation and bias stay f32.
    if cast_to_bf16 and x2d.dtype == jnp.float32:
        x2d = x2d.astype(jnp.bfloat16)
    if cast_to_bf16 and w.dtype == jnp.float32:
        w = w.astype(jnp.bfloat16)
    b2d = b.reshape(1, nf).astype(jnp.float32)

    xsize = x2d.dtype.itemsize
    wsize = w.dtype.itemsize
    osize = jnp.dtype(out_dtype).itemsize
    quantum = _sublane_quantum(xsize)

    # --- generation-aware VMEM budget ---------------------------------------
    vmem_capacity = _vmem_capacity_bytes()
    vmem_cap = max(32 * 1024 * 1024, vmem_capacity - 16 * 1024 * 1024)
    tile_budget = int(vmem_cap * 0.85)

    if tm_max is None:
        tm_max = 1024 if vmem_capacity >= 96 * 1024 * 1024 else 512
    if tn_max is None:
        tn_max = 1024

    # --- budget-driven tile selection ----------------------------------------
    tm = M if M <= tm_max else _round_down(tm_max, quantum)
    tn = nf if nf <= tn_max else _round_down(tn_max, 128)

    # Decode-style shapes (single M block, single N block): split N so both
    # TensorCores of a v7x megacore have parallel work (harmless on v5e/v6e).
    if M <= tm and nf >= 256 and tn >= nf:
        tn = _round_down(nf // 2, 128)

    tk_cands = _tk_candidates(nx, tk_max)

    def _fits(tm_, tn_, tk_):
        nk_ = nx // tk_
        return _vmem_need(tm_, tn_, tk_, nk_, xsize, wsize, osize) <= tile_budget

    tk = None
    while True:
        for cand in tk_cands:          # prefer tk = nx (nk == 1, fast path)
            if _fits(tm, tn, cand):
                tk = cand
                break
        if tk is not None:
            break
        if tm > quantum:               # shrink rows first, then output width
            tm = _round_down(tm // 2, quantum)
            continue
        if tn > 128:
            tn = _round_down(tn // 2, 128)
            continue
        tk = tk_cands[-1]              # cannot shrink further
        break

    nk = nx // tk
    ni = pl.cdiv(M, tm)
    nj = pl.cdiv(nf, tn)

    # --- grid ordering: fetch the larger operand once, re-stream the smaller --
    m_outer = (M * xsize) > (nf * wsize)

    if nk == 1:
        kernel = _conv1d_kernel_fullk
        scratch = []
        if m_outer:
            grid = (ni, nj)
            x_map = lambda i, j: (i, 0)
            w_map = lambda i, j: (0, j)
            b_map = lambda i, j: (0, j)
            o_map = lambda i, j: (i, j)
        else:
            grid = (nj, ni)
            x_map = lambda j, i: (i, 0)
            w_map = lambda j, i: (0, j)
            b_map = lambda j, i: (0, j)
            o_map = lambda j, i: (i, j)
        dim_sem = ("parallel", "parallel")
    else:
        kernel = _conv1d_kernel_ksplit
        scratch = [pltpu.VMEM((tm, tn), jnp.float32)]
        if m_outer:
            grid = (ni, nj, nk)
            x_map = lambda i, j, k: (i, k)
            w_map = lambda i, j, k: (k, j)
            b_map = lambda i, j, k: (0, j)
            o_map = lambda i, j, k: (i, j)
        else:
            grid = (nj, ni, nk)
            x_map = lambda j, i, k: (i, k)
            w_map = lambda j, i, k: (k, j)
            b_map = lambda j, i, k: (0, j)
            o_map = lambda j, i, k: (i, j)
        dim_sem = ("parallel", "parallel", "arbitrary")

    vmem_need = _vmem_need(tm, tn, tk, nk, xsize, wsize, osize)
    vmem_limit = int(min(vmem_cap, max(2 * vmem_need, 32 * 1024 * 1024)))

    # HBM traffic hint: the non-resident operand is re-streamed across the outer
    # axis; with K tiling both operands are re-streamed.
    if nk == 1:
        x_passes = 1 if m_outer else nj
        w_passes = ni if m_outer else 1
    else:
        x_passes, w_passes = nj, ni
    cost = pl.CostEstimate(
        flops=2 * M * nx * nf,
        transcendentals=0,
        bytes_accessed=(M * nx * xsize * x_passes
                        + nx * nf * wsize * w_passes
                        + nf * 4 + M * nf * osize),
    )

    out = pl.pallas_call(
        kernel,
        out_shape=jax.ShapeDtypeStruct((M, nf), out_dtype),
        grid_spec=pltpu.PrefetchScalarGridSpec(
            num_scalar_prefetch=0,
            grid=grid,
            in_specs=[
                pl.BlockSpec((tm, tk), x_map),   # activation rows
                pl.BlockSpec((tk, tn), w_map),   # weight tile
                pl.BlockSpec((1, tn), b_map),    # f32 bias row
            ],
            out_specs=pl.BlockSpec((tm, tn), o_map),
            scratch_shapes=scratch,
        ),
        compiler_params=pltpu.CompilerParams(
            dimension_semantics=dim_sem,
            vmem_limit_bytes=vmem_limit,
        ),
        cost_estimate=cost,
    )(x2d, w, b2d)

    return out.reshape(*lead, nf)


if __name__ == "__main__":
    # Deterministic params matching Conv1D.__init__ (rf=1):
    #   w ~ Normal(0, 0.02) of shape (nx, nf), b = zeros(nf)
    nx, nf = 32, 64
    B, T = 2, 8

    key = jax.random.PRNGKey(0)
    kx, kw = jax.random.split(key)
    x = jax.random.normal(kx, (B, T, nx), dtype=jnp.float32)
    w = 0.02 * jax.random.normal(kw, (nx, nf), dtype=jnp.float32)
    b = jnp.zeros((nf,), dtype=jnp.float32)

    y = conv1d(x, w, b)
    jax.block_until_ready(y)
    y_ref = (x.reshape(-1, nx) @ w + b).reshape(B, T, nf)
    assert y.shape == (B, T, nf)
    assert jnp.allclose(y, y_ref, atol=1e-5, rtol=1e-5)

    # Multi-tile path: partial M edge block, 2 N tiles, 2 K tiles (K-split
    # kernel + accumulator, N-outer ordering since the weights dominate).
    nx2, nf2 = 256, 256
    B2, T2 = 2, 50
    k2x, k2w, k2b = jax.random.split(jax.random.PRNGKey(1), 3)
    x2 = jax.random.normal(k2x, (B2, T2, nx2), dtype=jnp.float32)
    w2 = 0.02 * jax.random.normal(k2w, (nx2, nf2), dtype=jnp.float32)
    b2 = 0.1 * jax.random.normal(k2b, (nf2,), dtype=jnp.float32)
    y2 = conv1d(x2, w2, b2, tm_max=32, tn_max=128, tk_max=128)
    jax.block_until_ready(y2)
    y2_ref = (x2.reshape(-1, nx2) @ w2 + b2).reshape(B2, T2, nf2)
    assert jnp.allclose(y2, y2_ref, atol=1e-4, rtol=1e-4)

    # M-outer ordering + full-K fast path (activations dominate the weights).
    nx3, nf3 = 128, 64
    B3, T3 = 2, 150
    k3x, k3w = jax.random.split(jax.random.PRNGKey(2))
    x3 = jax.random.normal(k3x, (B3, T3, nx3), dtype=jnp.float32)
    w3 = 0.02 * jax.random.normal(k3w, (nx3, nf3), dtype=jnp.float32)
    b3 = jnp.zeros((nf3,), dtype=jnp.float32)
    y3 = conv1d(x3, w3, b3, tm_max=128)
    jax.block_until_ready(y3)
    y3_ref = (x3.reshape(-1, nx3) @ w3 + b3).reshape(B3, T3, nf3)
    assert jnp.allclose(y3, y3_ref, atol=1e-5, rtol=1e-5)

    # Optional MXU-native bf16 inputs (f32 accumulate + f32 bias): loose tol.
    y4 = conv1d(x2, w2, b2, cast_to_bf16=True)
    jax.block_until_ready(y4)
    assert jnp.allclose(y4, y2_ref, atol=3e-2, rtol=3e-2)

    # TODO(synk): rf != 1 raises NotImplementedError in the reference module, so it is not implemented here.
    print("KERNEL_OK")
</pallas_src>

<mosaic_0001>
module attributes {stable_mosaic.version = 11 : i64} {
  func.func @_conv1d_kernel_fullk(%arg0: i32, %arg1: i32, %arg2: memref<16x32xf32, #tpu.memory_space<vmem>>, %arg3: memref<32x64xf32, #tpu.memory_space<vmem>>, %arg4: memref<1x64xf32, #tpu.memory_space<vmem>>, %arg5: memref<16x64xf32, #tpu.memory_space<vmem>>) attributes {dimension_semantics = [#tpu.dimension_semantics<parallel>, #tpu.dimension_semantics<parallel>], iteration_bounds = array<i64: 1, 1>, scalar_prefetch = 0 : i64, scratch_operands = 0 : i64, tpu.core_type = #tpu.core_type<tc>, window_params = [{transform_indices = @transform_0, window_bounds = array<i64: 16, 32>}, {transform_indices = @transform_1, window_bounds = array<i64: 32, 64>}, {transform_indices = @transform_2, window_bounds = array<i64: 1, 64>}, {transform_indices = @transform_3, window_bounds = array<i64: 16, 64>}]} {
    %c0 = arith.constant 0 : index
    %c0_0 = arith.constant 0 : index
    %0 = vector.load %arg2[%c0, %c0_0] : memref<16x32xf32, #tpu.memory_space<vmem>>, vector<16x32xf32>
    %c0_1 = arith.constant 0 : index
    %c0_2 = arith.constant 0 : index
    %1 = vector.load %arg3[%c0_1, %c0_2] : memref<32x64xf32, #tpu.memory_space<vmem>>, vector<32x64xf32>
    %cst = arith.constant dense<0.000000e+00> : vector<16x64xf32>
    %2 = tpu.matmul %0, %1, %cst {dimension_numbers = #tpu.dot_dimension_numbers<[1], [0], [0], [1], [0, 0, 1, 1], [], []>} : vector<16x32xf32>, vector<32x64xf32>, vector<16x64xf32> -> vector<16x64xf32>
    %c0_3 = arith.constant 0 : index
    %c0_4 = arith.constant 0 : index
    %3 = vector.load %arg4[%c0_3, %c0_4] : memref<1x64xf32, #tpu.memory_space<vmem>>, vector<1x64xf32>
    %4 = vector.broadcast %3 : vector<1x64xf32> to vector<16x64xf32>
    %5 = arith.addf %2, %4 : vector<16x64xf32>
    %c0_5 = arith.constant 0 : index
    %c0_6 = arith.constant 0 : index
    %6 = vector.load %arg5[%c0_5, %c0_6] : memref<16x64xf32, #tpu.memory_space<vmem>>, vector<16x64xf32>
    tpu.vector_store %arg5[%c0_5, %c0_6], %5 {strides = array<i32>} : memref<16x64xf32, #tpu.memory_space<vmem>>, vector<16x64xf32>,
    return
  }
  func.func @transform_0(%arg0: i32, %arg1: i32) -> (i32, i32) {
    %c0_i32 = arith.constant 0 : i32
    %c0_i32_0 = arith.constant 0 : i32
    return %arg1, %c0_i32 : i32, i32
  }
  func.func @transform_1(%arg0: i32, %arg1: i32) -> (i32, i32) {
    %c0_i32 = arith.constant 0 : i32
    %c0_i32_0 = arith.constant 0 : i32
    return %c0_i32, %arg0 : i32, i32
  }
  func.func @transform_2(%arg0: i32, %arg1: i32) -> (i32, i32) {
    %c0_i32 = arith.constant 0 : i32
    %c0_i32_0 = arith.constant 0 : i32
    return %c0_i32, %arg0 : i32, i32
  }
  func.func @transform_3(%arg0: i32, %arg1: i32) -> (i32, i32) {
    %c0_i32 = arith.constant 0 : i32
    return %arg1, %arg0 : i32, i32
  }
}

</mosaic_0001>

<llo_original>
// kernel: tpu_custom_call.1
$region0: #{tpu_custom_call.1}
  #allocation0 [shape = 'u32[]', space=smem, size = 0x4, offset = 0x4, fixed_abs, tag = 'smem constant byte address 0x4 - core index']
  #allocation1 [shape = 'u32[144,128]{1,0:T(1,128)}', space=vmem, size = 0x12000, scoped, tag = 'internal scratch']
  %s0 = inlined_call_operand.hbm [shape: f32[16,32], index: 0, kind: input, shape index: {}]
  %s1 = inlined_call_operand.hbm [shape: f32[32,64], index: 1, kind: input, shape index: {}]
  %s2 = inlined_call_operand.vmem [shape: f32[1,64], index: 2, kind: input, shape index: {}]
  %s3 = inlined_call_operand.hbm [shape: f32[16,64], index: 3, kind: output, shape index: {}]
  %s4 = sld [smem:[#allocation0]]
  $region30: #{tpu_custom_call.1} parent=0
    _
  %s6 = ssub.s32 1, %s4
  %s7 = scalar_select 0, %s6, %s4
  $region1: #{tpu_custom_call.1} parent=0
    #allocation2 [shape = 'u8[8192]{0}', space=vmem, size = 0x2000, scoped, tag = 'input window, operand 0, single buffered']
    #allocation3 [shape = 's32[1]{0}', space=sflag, size = 0x4, scoped, tag = 'scoped memory for tpu_custom_call.1']
    #allocation4 [shape = 's32[1]{0}', space=sflag, size = 0x4, scoped, tag = 'scoped memory for tpu_custom_call.1']
    #allocation5 [shape = 'u8[16384]{0}', space=vmem, size = 0x4000, scoped, tag = 'input window, operand 1, single buffered']
    #allocation6 [shape = 's32[1]{0}', space=sflag, size = 0x4, scoped, tag = 'scoped memory for tpu_custom_call.1']
    #allocation7 [shape = 'u8[8192]{0}', space=vmem, size = 0x2000, scoped, tag = 'output window, operand 0, single buffered']
    %8 = vsyncpa [#allocation3], 0
    %9 = vsyncpa [#allocation6], 0
    %10 = vsyncpa [#allocation4], 0
    // Predicated region
    $region2: #{tpu_custom_call.1} parent=1 // pred_check
      _
    $region3: #{tpu_custom_call.1} parent=1 // pred_check_branch
      %12 = sbr.rel (0) target = $region5
    $region4: #{tpu_custom_call.1} parent=1 // pred_region
      %s14 = ssub.s32 256, 256
      %15 = vsyncadd [#allocation3], %s14
      %s16 = sshll.u32 [#allocation2], 4
      %s17 = int_to_ptr.vmem [resolvable:$true] %s16
      %22 = dma.hbm_to_vmem [thread:$0]  %s0, 256, %s17, [#allocation3], 128, 128, 8
    $region5: #{tpu_custom_call.1} parent=1 // pred_fallthru
      _
    // Predicated region
    $region6: #{tpu_custom_call.1} parent=1 // pred_check
      _
    $region7: #{tpu_custom_call.1} parent=1 // pred_check_branch
      %24 = sbr.rel (0) target = $region9
    $region8: #{tpu_custom_call.1} parent=1 // pred_region
      %s26 = ssub.s32 512, 512
      %27 = vsyncadd [#allocation6], %s26
      %s28 = sshll.u32 [#allocation5], 4
      %s29 = int_to_ptr.vmem [resolvable:$true] %s28
      %34 = dma.hbm_to_vmem [thread:$0]  %s1, 512, %s29, [#allocation6], 128, 128, 8
    $region9: #{tpu_custom_call.1} parent=1 // pred_fallthru
      _
    // Predicated region
    $region10: #{tpu_custom_call.1} parent=1 // pred_check
      _
    $region11: #{tpu_custom_call.1} parent=1 // pred_check_branch
      %36 = sbr.rel (0) target = $region13
    $region12: #{tpu_custom_call.1} parent=1 // pred_region
      _
    $region13: #{tpu_custom_call.1} parent=1 // pred_fallthru
      _
    // Predicated region
    $region14: #{tpu_custom_call.1} parent=1 // pred_check
      _
    $region15: #{tpu_custom_call.1} parent=1 // pred_check_branch
      %38 = sbr.rel (0) target = $region17
    $region16: #{tpu_custom_call.1} parent=1 // pred_region
      %39 = dma.done [#allocation3], 256
    $region17: #{tpu_custom_call.1} parent=1 // pred_fallthru
      _
    // Predicated region
    $region18: #{tpu_custom_call.1} parent=1 // pred_check
      _
    $region19: #{tpu_custom_call.1} parent=1 // pred_check_branch
      %41 = sbr.rel (0) target = $region21
    $region20: #{tpu_custom_call.1} parent=1 // pred_region
      %42 = dma.done [#allocation6], 512
    $region21: #{tpu_custom_call.1} parent=1 // pred_fallthru
      _
    %v43 = vld [vmem:[#allocation2] sm:$0xff]
    %v44 = vld [vmem:[#allocation2 + $0x8] sm:$0xff]
    %v45 = vld [vmem:[#allocation5] sm:$0xff]
    %v46 = vld [vmem:[#allocation5 + $0x8] sm:$0xff]
    %v47 = vld [vmem:[#allocation5 + $0x10] sm:$0xff]
    %v48 = vld [vmem:[#allocation5 + $0x18] sm:$0xff]
    %v49 = vld [vmem:[%s2] sm:$0x1]
    %v51 = vlaneseq
    %v52 = vshrl.u32 %v51, 7
    %v53 = vsub.s32 0, %v52
    %v54 = vrot.slane %v49, %v53
    %vm56 = vcmask 261120
    %v58 = vsel %vm56, %v43, 0
    %v61 = vsel %vm56, %v44, 0
    %63 = vmatprep.subr.mxu0 0.0
    %64 = vmatpush1.msra.mxu0 %v45
    %65 = vmatprep.subr.mxu0 0.0
    %66 = vmatpush1.msra.mxu0 %v46
    %67 = vmatprep.subr.mxu0 0.0
    %68 = vmatpush1.msra.mxu0 %v47
    %69 = vmatprep.subr.mxu0 0.0
    %70 = vmatpush1.msra.mxu0 %v48
    %71 = vmatprep.subr.mxu0 0.0
    %72 = vmatpush1.msra.mxu0 0.0
    %73 = vmatprep.subr.mxu0 0.0
    %74 = vmatpush1.msra.mxu0 0.0
    %75 = vmatprep.subr.mxu0 0.0
    %76 = vmatpush1.msra.mxu0 0.0
    %77 = vmatprep.subr.mxu0 0.0
    %78 = vmatpush1.msra.mxu0 0.0
    %79 = vmatprep.subr.mxu0 0.0
    %80 = vmatpush1.msra.mxu0 0.0
    %81 = vmatprep.subr.mxu0 0.0
    %82 = vmatpush1.msra.mxu0 0.0
    %83 = vmatprep.subr.mxu0 0.0
    %84 = vmatpush1.msra.mxu0 0.0
    %85 = vmatprep.subr.mxu0 0.0
    %86 = vmatpush1.msra.mxu0 0.0
    %87 = vmatprep.subr.mxu0 0.0
    %88 = vmatpush1.msra.mxu0 0.0
    %89 = vmatprep.subr.mxu0 0.0
    %90 = vmatpush1.msra.mxu0 0.0
    %91 = vmatprep.subr.mxu0 0.0
    %92 = vmatpush1.msra.mxu0 0.0
    %93 = vmatprep.subr.mxu0 0.0
    %94 = vmatpush1.msra.mxu0 0.0
    %95 = vmatprep.subr.mxu0 0.0
    %96 = vmatpush1.msra.mxu0 0.0
    %97 = vmatprep.subr.mxu0 0.0
    %98 = vmatpush1.msra.mxu0 0.0
    %99 = vmatprep.subr.mxu0 0.0
    %100 = vmatpush1.msra.mxu0 0.0
    %101 = vmatprep.subr.mxu0 0.0
    %102 = vmatpush1.msra.mxu0 0.0
    %103 = vmatprep.subr.mxu0 0.0
    %104 = vmatpush1.msra.mxu0 0.0
    %105 = vmatprep.subr.mxu0 0.0
    %106 = vmatpush1.msra.mxu0 0.0
    %107 = vmatprep.subr.mxu0 0.0
    %108 = vmatpush1.msra.mxu0 0.0
    %109 = vmatprep.subr.mxu0 0.0
    %110 = vmatpush1.msra.mxu0 0.0
    %111 = vmatprep.subr.mxu0 0.0
    %112 = vmatpush1.msra.mxu0 0.0
    %113 = vmatprep.subr.mxu0 0.0
    %114 = vmatpush1.msra.mxu0 0.0
    %115 = vmatprep.subr.mxu0 0.0
    %116 = vmatpush1.msra.mxu0 0.0
    %117 = vmatprep.subr.mxu0 0.0
    %118 = vmatpush1.msra.mxu0 0.0
    %119 = vmatprep.subr.mxu0 0.0
    %120 = vmatpush1.msra.mxu0 0.0
    %121 = vmatprep.subr.mxu0 0.0
    %122 = vmatpush1.msra.mxu0 0.0
    %123 = vmatprep.subr.mxu0 0.0
    %124 = vmatpush1.msra.mxu0 0.0
    %125 = vmatprep.subr.mxu0 0.0
    %126 = vmatpush1.msra.mxu0 0.0
    %127 = vmatprep.mubr.f32.mxu0 0.0
    %128 = vmatmul.mubr.f32.gmra.mrb[0].mxu0 %v58
    %v129 = vpop.f32.mrb[0].mxu0
    %v130 = vadd.f32 %v54, %v129
    %v131 = vpop.f32.mrb[0].mxu0
    %132 = vmatprep.mubr.f32.mxu0 0.0
    %133 = vmatmul.mubr.f32.gmra.mrb[0].mxu0 %v61
    %v134 = vpop.f32.mrb[0].mxu0
    %v135 = vadd.f32 %v54, %v134
    %v136 = vpop.f32.mrb[0].mxu0
    %137 = vdwg.mxu0
    %vm138 = vcmask 523264
    %139 = vst.msk [vmem:[#allocation7] sm:$0xff] %vm138, %v130
    %140 = vst.msk [vmem:[#allocation7 + $0x8] sm:$0xff] %vm138, %v135
    // Predicated region
    $region22: #{tpu_custom_call.1} parent=1 // pred_check
      _
    $region23: #{tpu_custom_call.1} parent=1 // pred_check_branch
      %142 = sbr.rel (0) target = $region25
    $region24: #{tpu_custom_call.1} parent=1 // pred_region
      %s144 = ssub.s32 256, 256
      %145 = vsyncadd [#allocation4], %s144
      %s146 = sshll.u32 [#allocation7], 4
      %s147 = int_to_ptr.vmem [resolvable:$true] %s146
      %152 = dma.vmem_to_hbm [thread:$0]  %s147, 256, %s3, [#allocation4], 128, 128, 8
    $region25: #{tpu_custom_call.1} parent=1 // pred_fallthru
      _
    // Predicated region
    $region26: #{tpu_custom_call.1} parent=1 // pred_check
      _
    $region27: #{tpu_custom_call.1} parent=1 // pred_check_branch
      %154 = sbr.rel (0) target = $region29
    $region28: #{tpu_custom_call.1} parent=1 // pred_region
      %155 = dma.done [#allocation4], 256
    $region29: #{tpu_custom_call.1} parent=1 // pred_fallthru
      _
    %156 = vsyncpa [#allocation3], 1
    %157 = vsyncpa [#allocation6], 1
    %158 = vsyncpa [#allocation4], 1

</llo_original>
